<compile_context>
chip_gen: v7x
topology: tpu7x:2x2x1
jax: 0.10.0
libtpu: 0.0.40
codegen_flags: <defaults>
</compile_context>

<pallas_src>
import functools

import jax
import jax.numpy as jnp
from jax import lax
from jax.experimental import pallas as pl
from jax.experimental.pallas import tpu as pltpu

# nn.Linear layer dims as (out_features, in_features).
LAYER_DIMS = [(10, 19), (20, 10), (10, 20), (5, 10), (1, 5)]
N_LAYERS = len(LAYER_DIMS)
F_IN = LAYER_DIMS[0][1]   # 19
F_PAD = 32                # every hidden layer's in/out padded to 32 (>= max dim 20)
LAST_ROWS = 8             # last layer: only 8 padded rows (row 0 is the real output)


def iris_mlp_kernel(x_ref, w0_ref, w_ref, b_ref, o_ref):
    """x_ref:  (TB, F_IN)  batch-major input tile (caller's dtype).
    w0_ref: (F_PAD, F_IN) layer-0 weight (compute_dtype).
    w_ref:  ((N_LAYERS-1)*F_PAD, F_PAD) packed, zero-padded weights for layers 1..4.
    b_ref:  (N_LAYERS*F_PAD, 1) packed, zero-padded biases (f32, added post-MXU).
    o_ref:  (1, TB) sigmoid output (lane-dense store)."""
    compute_dtype = w0_ref.dtype
    x = x_ref[...].astype(compute_dtype)                     # (TB, F_IN)

    # Layer 0: contract over the in-feature (lane) axis of BOTH operands -> W0 @ x^T,
    # producing the feature-major (F_PAD, TB) activation without any wrapper transpose.
    z = lax.dot_general(w0_ref[...], x, (((1,), (1,)), ((), ())),
                        preferred_element_type=jnp.float32)
    z = z + b_ref[0:F_PAD, :]                                # (F_PAD, TB) f32
    y = jnp.maximum(z, 0.0).astype(compute_dtype)

    # Layers 1..3: feature-major (F_PAD, F_PAD) @ (F_PAD, TB), batch stays on lanes.
    for l in range(1, N_LAYERS - 1):
        w = w_ref[(l - 1) * F_PAD:l * F_PAD, :]              # static slice
        b = b_ref[l * F_PAD:(l + 1) * F_PAD, :]
        zl = jnp.dot(w, y, preferred_element_type=jnp.float32) + b
        y = jnp.maximum(zl, 0.0).astype(compute_dtype)

    # Last layer: only LAST_ROWS of the 32 padded rows are needed (row 0 is real).
    l = N_LAYERS - 1
    w = w_ref[(l - 1) * F_PAD:(l - 1) * F_PAD + LAST_ROWS, :]
    b = b_ref[l * F_PAD:l * F_PAD + LAST_ROWS, :]
    zl = jnp.dot(w, y, preferred_element_type=jnp.float32) + b   # (LAST_ROWS, TB)
    z_out = zl[0:1, :]                                           # (1, TB)

    # Exact sigmoid: exp runs on the EUP; exact divide is essentially free on (1, TB).
    o_ref[...] = 1.0 / (1.0 + jnp.exp(-z_out))


def pack_params(params, compute_dtype=jnp.bfloat16):
    """Pack [(W(out,in), b(out,)), ...] (nn.Linear layout) once at model load.

    Returns (w0_slab (F_PAD, F_IN), w_slab ((N-1)*F_PAD, F_PAD), b_slab (N*F_PAD, 1) f32).
    Padded rows/cols are zero, so they stay inert through every layer."""
    w0, b0 = params[0]
    w0_slab = jnp.zeros((F_PAD, F_IN), jnp.float32).at[:w0.shape[0], :].set(w0)
    w_slab = jnp.zeros(((N_LAYERS - 1) * F_PAD, F_PAD), jnp.float32)
    b_slab = jnp.zeros((N_LAYERS * F_PAD, 1), jnp.float32)
    b_slab = b_slab.at[:b0.shape[0], 0].set(b0)
    for l in range(1, N_LAYERS):
        w, b = params[l]
        out_d, in_d = w.shape
        w_slab = w_slab.at[(l - 1) * F_PAD:(l - 1) * F_PAD + out_d, :in_d].set(w)
        b_slab = b_slab.at[l * F_PAD:l * F_PAD + out_d, 0].set(b)
    return w0_slab.astype(compute_dtype), w_slab.astype(compute_dtype), b_slab


def _pick_batch_tile(b_pad, max_tile):
    """Largest power-of-two tile <= max_tile that divides b_pad, preferring >= 2 grid
    steps when possible so the 'parallel' batch axis spans both TCs on v7x."""
    cap = min(max_tile, b_pad if b_pad <= 128 else max(b_pad // 2, 128))
    for cand in (32768, 16384, 8192, 4096, 2048, 1024, 512, 256, 128):
        if cand <= cap and b_pad % cand == 0:
            return cand
    return 128


@functools.partial(jax.jit, static_argnames=("max_tile",))
def iris_bcf_forward(x, w0_slab, w_slab, b_slab, *, max_tile=32768):
    """x: (B, 19) batch-major (any float dtype; bf16 halves the HBM input stream).
    w0_slab/w_slab/b_slab: output of pack_params (hoisted out of the per-call path).
    Returns (B, 1) f32 sigmoid outputs."""
    B, F = x.shape
    assert F == F_IN
    b_pad = max(128, ((B + 127) // 128) * 128)   # batch padded to a lane multiple
    tb = _pick_batch_tile(b_pad, max_tile)       # batch tile (lives on the lane axis)

    # Only pad along batch (zeros), and only when needed — no transpose, no feature pad.
    if b_pad == B:
        x_p = x
    else:
        x_p = jnp.zeros((b_pad, F), x.dtype).at[:B, :].set(x)

    out = pl.pallas_call(
        iris_mlp_kernel,
        out_shape=jax.ShapeDtypeStruct((1, b_pad), jnp.float32),
        grid_spec=pltpu.PrefetchScalarGridSpec(
            num_scalar_prefetch=0,
            grid=(b_pad // tb,),
            in_specs=[
                # (tb, 19): last dim == full array dim, so the (8,128) rule is satisfied.
                pl.BlockSpec((tb, F_IN), lambda i: (i, 0)),
                # Constant-index operands: resident across the batch grid (~20 KiB total).
                pl.BlockSpec((F_PAD, F_IN), lambda i: (0, 0)),
                pl.BlockSpec(((N_LAYERS - 1) * F_PAD, F_PAD), lambda i: (0, 0)),
                pl.BlockSpec((N_LAYERS * F_PAD, 1), lambda i: (0, 0)),
            ],
            out_specs=pl.BlockSpec((1, tb), lambda i: (0, i)),   # lane-dense output
        ),
        compiler_params=pltpu.CompilerParams(
            dimension_semantics=("parallel",),
            vmem_limit_bytes=48 * 1024 * 1024,
        ),
    )(x_p, w0_slab, w_slab, b_slab)

    return out[0, :B].reshape(B, 1)


def init_params():
    """Deterministic init matching nn.Linear shapes: W (out, in), b (out,)."""
    params = []
    key = jax.random.PRNGKey(42)
    for d_out, d_in in LAYER_DIMS:
        key, kw, kb = jax.random.split(key, 3)
        bound = 1.0 / jnp.sqrt(d_in)
        w = jax.random.uniform(kw, (d_out, d_in), jnp.float32, -bound, bound)
        b = jax.random.uniform(kb, (d_out,), jnp.float32, -bound, bound)
        params.append((w, b))
    return params


def reference_forward(x, params):
    y = x
    for i, (w, b) in enumerate(params):
        y = y @ w.T + b
        if i < len(params) - 1:
            y = jnp.maximum(y, 0.0)
    return jax.nn.sigmoid(y)


if __name__ == "__main__":
    B = 8
    key = jax.random.PRNGKey(0)
    x = jax.random.normal(key, (B, 19), jnp.float32)

    params = init_params()
    ref = reference_forward(x, params)

    # f32 path (tight tolerance).
    w0_f32, w_f32, b_f32 = pack_params(params, compute_dtype=jnp.float32)
    out_f32 = jax.block_until_ready(iris_bcf_forward(x, w0_f32, w_f32, b_f32))
    assert out_f32.shape == (B, 1), out_f32.shape
    assert jnp.allclose(out_f32, ref, atol=1e-5, rtol=1e-5), (out_f32, ref)

    # bf16 production default (v6e/v7x): halves the HBM-resident weight/activation bytes.
    w0_bf, w_bf, b_bf = pack_params(params)  # compute_dtype=jnp.bfloat16
    out_bf = jax.block_until_ready(iris_bcf_forward(x, w0_bf, w_bf, b_bf))
    assert jnp.allclose(out_bf, ref, atol=3e-2, rtol=3e-2), (out_bf, ref)

    print("KERNEL_OK")
</pallas_src>

<mosaic_0001>
module attributes {stable_mosaic.version = 11 : i64} {
  func.func @iris_mlp_kernel(%arg0: i32, %arg1: memref<128x19xf32, #tpu.memory_space<vmem>>, %arg2: memref<32x19xf32, #tpu.memory_space<vmem>>, %arg3: memref<128x32xf32, #tpu.memory_space<vmem>>, %arg4: memref<160x1xf32, #tpu.memory_space<vmem>>, %arg5: memref<1x128xf32, #tpu.memory_space<vmem>>) attributes {dimension_semantics = [#tpu.dimension_semantics<parallel>], iteration_bounds = array<i64: 1>, scalar_prefetch = 0 : i64, scratch_operands = 0 : i64, tpu.core_type = #tpu.core_type<tc>, window_params = [{transform_indices = @transform_0, window_bounds = array<i64: 128, 19>}, {pipeline_mode = #tpu.pipeline_mode<synchronous>, transform_indices = @transform_1, window_bounds = array<i64: 32, 19>}, {pipeline_mode = #tpu.pipeline_mode<synchronous>, transform_indices = @transform_2, window_bounds = array<i64: 128, 32>}, {pipeline_mode = #tpu.pipeline_mode<synchronous>, transform_indices = @transform_3, window_bounds = array<i64: 160, 1>}, {transform_indices = @transform_4, window_bounds = array<i64: 1, 128>}]} {
    %c0 = arith.constant 0 : index
    %c0_0 = arith.constant 0 : index
    %0 = vector.load %arg1[%c0, %c0_0] : memref<128x19xf32, #tpu.memory_space<vmem>>, vector<128x19xf32>
    %c0_1 = arith.constant 0 : index
    %c0_2 = arith.constant 0 : index
    %1 = vector.load %arg2[%c0_1, %c0_2] : memref<32x19xf32, #tpu.memory_space<vmem>>, vector<32x19xf32>
    %cst = arith.constant dense<0.000000e+00> : vector<32x128xf32>
    %2 = tpu.matmul %1, %0, %cst {dimension_numbers = #tpu.dot_dimension_numbers<[1], [1], [0], [0], [0, 0, 1, 0], [], []>} : vector<32x19xf32>, vector<128x19xf32>, vector<32x128xf32> -> vector<32x128xf32>
    %c0_3 = arith.constant 0 : index
    %c0_4 = arith.constant 0 : index
    %3 = vector.load %arg4[%c0_3, %c0_4] : memref<160x1xf32, #tpu.memory_space<vmem>>, vector<32x1xf32>
    %4 = vector.broadcast %3 : vector<32x1xf32> to vector<32x128xf32>
    %5 = arith.addf %2, %4 : vector<32x128xf32>
    %cst_5 = arith.constant 0.000000e+00 : f32
    %6 = vector.broadcast %cst_5 : f32 to vector<32x128xf32>
    %7 = arith.maximumf %5, %6 : vector<32x128xf32>
    %c0_6 = arith.constant 0 : index
    %c0_7 = arith.constant 0 : index
    %8 = vector.load %arg3[%c0_6, %c0_7] : memref<128x32xf32, #tpu.memory_space<vmem>>, vector<32x32xf32>
    %c32 = arith.constant 32 : index
    %c0_8 = arith.constant 0 : index
    %9 = vector.load %arg4[%c32, %c0_8] : memref<160x1xf32, #tpu.memory_space<vmem>>, vector<32x1xf32>
    %cst_9 = arith.constant dense<0.000000e+00> : vector<32x128xf32>
    %10 = tpu.matmul %8, %7, %cst_9 {dimension_numbers = #tpu.dot_dimension_numbers<[1], [0], [0], [1], [0, 0, 1, 1], [], []>} : vector<32x32xf32>, vector<32x128xf32>, vector<32x128xf32> -> vector<32x128xf32>
    %11 = vector.broadcast %9 : vector<32x1xf32> to vector<32x128xf32>
    %12 = arith.addf %10, %11 : vector<32x128xf32>
    %cst_10 = arith.constant 0.000000e+00 : f32
    %13 = vector.broadcast %cst_10 : f32 to vector<32x128xf32>
    %14 = arith.maximumf %12, %13 : vector<32x128xf32>
    %c32_11 = arith.constant 32 : index
    %c0_12 = arith.constant 0 : index
    %15 = vector.load %arg3[%c32_11, %c0_12] : memref<128x32xf32, #tpu.memory_space<vmem>>, vector<32x32xf32>
    %c64 = arith.constant 64 : index
    %c0_13 = arith.constant 0 : index
    %16 = vector.load %arg4[%c64, %c0_13] : memref<160x1xf32, #tpu.memory_space<vmem>>, vector<32x1xf32>
    %cst_14 = arith.constant dense<0.000000e+00> : vector<32x128xf32>
    %17 = tpu.matmul %15, %14, %cst_14 {dimension_numbers = #tpu.dot_dimension_numbers<[1], [0], [0], [1], [0, 0, 1, 1], [], []>} : vector<32x32xf32>, vector<32x128xf32>, vector<32x128xf32> -> vector<32x128xf32>
    %18 = vector.broadcast %16 : vector<32x1xf32> to vector<32x128xf32>
    %19 = arith.addf %17, %18 : vector<32x128xf32>
    %cst_15 = arith.constant 0.000000e+00 : f32
    %20 = vector.broadcast %cst_15 : f32 to vector<32x128xf32>
    %21 = arith.maximumf %19, %20 : vector<32x128xf32>
    %c64_16 = arith.constant 64 : index
    %c0_17 = arith.constant 0 : index
    %22 = vector.load %arg3[%c64_16, %c0_17] : memref<128x32xf32, #tpu.memory_space<vmem>>, vector<32x32xf32>
    %c96 = arith.constant 96 : index
    %c0_18 = arith.constant 0 : index
    %23 = vector.load %arg4[%c96, %c0_18] : memref<160x1xf32, #tpu.memory_space<vmem>>, vector<32x1xf32>
    %cst_19 = arith.constant dense<0.000000e+00> : vector<32x128xf32>
    %24 = tpu.matmul %22, %21, %cst_19 {dimension_numbers = #tpu.dot_dimension_numbers<[1], [0], [0], [1], [0, 0, 1, 1], [], []>} : vector<32x32xf32>, vector<32x128xf32>, vector<32x128xf32> -> vector<32x128xf32>
    %25 = vector.broadcast %23 : vector<32x1xf32> to vector<32x128xf32>
    %26 = arith.addf %24, %25 : vector<32x128xf32>
    %cst_20 = arith.constant 0.000000e+00 : f32
    %27 = vector.broadcast %cst_20 : f32 to vector<32x128xf32>
    %28 = arith.maximumf %26, %27 : vector<32x128xf32>
    %c96_21 = arith.constant 96 : index
    %c0_22 = arith.constant 0 : index
    %29 = vector.load %arg3[%c96_21, %c0_22] : memref<128x32xf32, #tpu.memory_space<vmem>>, vector<8x32xf32>
    %c128 = arith.constant 128 : index
    %c0_23 = arith.constant 0 : index
    %30 = vector.load %arg4[%c128, %c0_23] : memref<160x1xf32, #tpu.memory_space<vmem>>, vector<8x1xf32>
    %cst_24 = arith.constant dense<0.000000e+00> : vector<8x128xf32>
    %31 = tpu.matmul %29, %28, %cst_24 {dimension_numbers = #tpu.dot_dimension_numbers<[1], [0], [0], [1], [0, 0, 1, 1], [], []>} : vector<8x32xf32>, vector<32x128xf32>, vector<8x128xf32> -> vector<8x128xf32>
    %32 = vector.broadcast %30 : vector<8x1xf32> to vector<8x128xf32>
    %33 = arith.addf %31, %32 : vector<8x128xf32>
    %34 = vector.extract_strided_slice %33 {offsets = [0, 0], sizes = [1, 128], strides = [1, 1]} : vector<8x128xf32> to vector<1x128xf32>
    %cst_25 = arith.constant 0.000000e+00 : f32
    %35 = vector.broadcast %cst_25 : f32 to vector<1x128xf32>
    %36 = arith.subf %35, %34 : vector<1x128xf32>
    %37 = math.exp %36 : vector<1x128xf32>
    %cst_26 = arith.constant 1.000000e+00 : f32
    %38 = vector.broadcast %cst_26 : f32 to vector<1x128xf32>
    %39 = arith.addf %38, %37 : vector<1x128xf32>
    %cst_27 = arith.constant 1.000000e+00 : f32
    %40 = vector.broadcast %cst_27 : f32 to vector<1x128xf32>
    %41 = arith.divf %40, %39 : vector<1x128xf32>
    %c0_28 = arith.constant 0 : index
    %c0_29 = arith.constant 0 : index
    %42 = vector.load %arg5[%c0_28, %c0_29] : memref<1x128xf32, #tpu.memory_space<vmem>>, vector<1x128xf32>
    tpu.vector_store %arg5[%c0_28, %c0_29], %41 {strides = array<i32>} : memref<1x128xf32, #tpu.memory_space<vmem>>, vector<1x128xf32>,
    return
  }
  func.func @transform_0(%arg0: i32) -> (i32, i32) {
    %c0_i32 = arith.constant 0 : i32
    %c0_i32_0 = arith.constant 0 : i32
    return %arg0, %c0_i32 : i32, i32
  }
  func.func @transform_1(%arg0: i32) -> (i32, i32) {
    %c0_i32 = arith.constant 0 : i32
    %c0_i32_0 = arith.constant 0 : i32
    %c0_i32_1 = arith.constant 0 : i32
    return %c0_i32, %c0_i32_0 : i32, i32
  }
  func.func @transform_2(%arg0: i32) -> (i32, i32) {
    %c0_i32 = arith.constant 0 : i32
    %c0_i32_0 = arith.constant 0 : i32
    %c0_i32_1 = arith.constant 0 : i32
    return %c0_i32, %c0_i32_0 : i32, i32
  }
  func.func @transform_3(%arg0: i32) -> (i32, i32) {
    %c0_i32 = arith.constant 0 : i32
    %c0_i32_0 = arith.constant 0 : i32
    %c0_i32_1 = arith.constant 0 : i32
    return %c0_i32, %c0_i32_0 : i32, i32
  }
  func.func @transform_4(%arg0: i32) -> (i32, i32) {
    %c0_i32 = arith.constant 0 : i32
    %c0_i32_0 = arith.constant 0 : i32
    return %c0_i32, %arg0 : i32, i32
  }
}

</mosaic_0001>

<llo_original>
// kernel: iris_bcf_forward.1
$region0: #{iris_bcf_forward.1}
  #allocation0 [shape = 'u32[]', space=smem, size = 0x4, offset = 0x4, fixed_abs, tag = 'smem constant byte address 0x4 - core index']
  #allocation1 [shape = 'u32[144,128]{1,0:T(1,128)}', space=vmem, size = 0x12000, scoped, tag = 'internal scratch']
  %s0 = inlined_call_operand.vmem [shape: f32[128,19], index: 0, kind: input, shape index: {}]
  %s1 = inlined_call_operand.vmem [shape: f32[32,19], index: 1, kind: input, shape index: {}]
  %s2 = inlined_call_operand.vmem [shape: f32[128,32], index: 2, kind: input, shape index: {}]
  %s3 = inlined_call_operand.vmem [shape: f32[160,1], index: 3, kind: input, shape index: {}]
  %s4 = inlined_call_operand.vmem [shape: f32[1,128], index: 4, kind: output, shape index: {}]
  %s5 = sld [smem:[#allocation0]]
  $region26: #{iris_bcf_forward.1} parent=0
    _
  %s7 = ssub.s32 1, %s5
  %s8 = scalar_select 0, %s7, %s5
  // Predicated region
  $region2: #{iris_bcf_forward.1} parent=0 // pred_check
    _
  $region3: #{iris_bcf_forward.1} parent=0 // pred_check_branch
    %10 = sbr.rel (0) target = $region5
  $region4: #{iris_bcf_forward.1} parent=0 // pred_region
    _
  $region5: #{iris_bcf_forward.1} parent=0 // pred_fallthru
    _
  // Predicated region
  $region6: #{iris_bcf_forward.1} parent=0 // pred_check
    _
  $region7: #{iris_bcf_forward.1} parent=0 // pred_check_branch
    %12 = sbr.rel (0) target = $region9
  $region8: #{iris_bcf_forward.1} parent=0 // pred_region
    _
  $region9: #{iris_bcf_forward.1} parent=0 // pred_fallthru
    _
  // Predicated region
  $region10: #{iris_bcf_forward.1} parent=0 // pred_check
    _
  $region11: #{iris_bcf_forward.1} parent=0 // pred_check_branch
    %14 = sbr.rel (0) target = $region13
  $region12: #{iris_bcf_forward.1} parent=0 // pred_region
    _
  $region13: #{iris_bcf_forward.1} parent=0 // pred_fallthru
    _
  // Predicated region
  $region14: #{iris_bcf_forward.1} parent=0 // pred_check
    _
  $region15: #{iris_bcf_forward.1} parent=0 // pred_check_branch
    %16 = sbr.rel (0) target = $region17
  $region16: #{iris_bcf_forward.1} parent=0 // pred_region
    _
  $region17: #{iris_bcf_forward.1} parent=0 // pred_fallthru
    _
  %v17 = vld [vmem:[%s0] sm:$0xff]
  %v18 = vld [vmem:[%s0 + $0x8] sm:$0xff]
  %v19 = vld [vmem:[%s0 + $0x10] sm:$0xff]
  %v20 = vld [vmem:[%s0 + $0x18] sm:$0xff]
  %v21 = vld [vmem:[%s0 + $0x20] sm:$0xff]
  %v22 = vld [vmem:[%s0 + $0x28] sm:$0xff]
  %v23 = vld [vmem:[%s0 + $0x30] sm:$0xff]
  %v24 = vld [vmem:[%s0 + $0x38] sm:$0xff]
  %v25 = vld [vmem:[%s0 + $0x40] sm:$0xff]
  %v26 = vld [vmem:[%s0 + $0x48] sm:$0xff]
  %v27 = vld [vmem:[%s0 + $0x50] sm:$0xff]
  %v28 = vld [vmem:[%s0 + $0x58] sm:$0xff]
  %v29 = vld [vmem:[%s0 + $0x60] sm:$0xff]
  %v30 = vld [vmem:[%s0 + $0x68] sm:$0xff]
  %v31 = vld [vmem:[%s0 + $0x70] sm:$0xff]
  %v32 = vld [vmem:[%s0 + $0x78] sm:$0xff]
  %v33 = vld [vmem:[%s1] sm:$0xff]
  %v34 = vld [vmem:[%s1 + $0x8] sm:$0xff]
  %v35 = vld [vmem:[%s1 + $0x10] sm:$0xff]
  %v36 = vld [vmem:[%s1 + $0x18] sm:$0xff]
  %v37 = vld [vmem:[%s3] sm:$0xff]
  %v38 = vld [vmem:[%s3 + $0x8] sm:$0xff]
  %v39 = vld [vmem:[%s3 + $0x10] sm:$0xff]
  %v40 = vld [vmem:[%s3 + $0x18] sm:$0xff]
  %42 = vset.pattern.permute.xlu0 0
  %43 = vperm.xlu0 %42, %v37
  %v44 = vpop.permute.xlu0 %43
  %47 = vset.pattern.permute.xlu0 0
  %48 = vperm.xlu0 %47, %v38
  %v49 = vpop.permute.xlu0 %48
  %52 = vset.pattern.permute.xlu0 0
  %53 = vperm.xlu0 %52, %v39
  %v54 = vpop.permute.xlu0 %53
  %57 = vset.pattern.permute.xlu0 0
  %58 = vperm.xlu0 %57, %v40
  %v59 = vpop.permute.xlu0 %58
  %vm61 = vcmask 154624
  %v63 = vsel %vm61, %v33, 0
  %v66 = vsel %vm61, %v34, 0
  %v69 = vsel %vm61, %v35, 0
  %v72 = vsel %vm61, %v36, 0
  %v75 = vsel %vm61, %v17, 0
  %v78 = vsel %vm61, %v18, 0
  %v81 = vsel %vm61, %v19, 0
  %v84 = vsel %vm61, %v20, 0
  %v87 = vsel %vm61, %v21, 0
  %v90 = vsel %vm61, %v22, 0
  %v93 = vsel %vm61, %v23, 0
  %v96 = vsel %vm61, %v24, 0
  %v99 = vsel %vm61, %v25, 0
  %v102 = vsel %vm61, %v26, 0
  %v105 = vsel %vm61, %v27, 0
  %v108 = vsel %vm61, %v28, 0
  %v111 = vsel %vm61, %v29, 0
  %v114 = vsel %vm61, %v30, 0
  %v117 = vsel %vm61, %v31, 0
  %v120 = vsel %vm61, %v32, 0
  %122 = vmatprep.subr.mxu0 0.0
  %123 = vmatpush1.xpose.msra.mxu0 %v75
  %124 = vmatprep.subr.mxu0 0.0
  %125 = vmatpush1.xpose.msra.mxu0 %v78
  %126 = vmatprep.subr.mxu0 0.0
  %127 = vmatpush1.xpose.msra.mxu0 %v81
  %128 = vmatprep.subr.mxu0 0.0
  %129 = vmatpush1.xpose.msra.mxu0 %v84
  %130 = vmatprep.subr.mxu0 0.0
  %131 = vmatpush1.xpose.msra.mxu0 %v87
  %132 = vmatprep.subr.mxu0 0.0
  %133 = vmatpush1.xpose.msra.mxu0 %v90
  %134 = vmatprep.subr.mxu0 0.0
  %135 = vmatpush1.xpose.msra.mxu0 %v93
  %136 = vmatprep.subr.mxu0 0.0
  %137 = vmatpush1.xpose.msra.mxu0 %v96
  %138 = vmatprep.subr.mxu0 0.0
  %139 = vmatpush1.xpose.msra.mxu0 %v99
  %140 = vmatprep.subr.mxu0 0.0
  %141 = vmatpush1.xpose.msra.mxu0 %v102
  %142 = vmatprep.subr.mxu0 0.0
  %143 = vmatpush1.xpose.msra.mxu0 %v105
  %144 = vmatprep.subr.mxu0 0.0
  %145 = vmatpush1.xpose.msra.mxu0 %v108
  %146 = vmatprep.subr.mxu0 0.0
  %147 = vmatpush1.xpose.msra.mxu0 %v111
  %148 = vmatprep.subr.mxu0 0.0
  %149 = vmatpush1.xpose.msra.mxu0 %v114
  %150 = vmatprep.subr.mxu0 0.0
  %151 = vmatpush1.xpose.msra.mxu0 %v117
  %152 = vmatprep.subr.mxu0 0.0
  %153 = vmatpush1.xpose.msra.mxu0 %v120
  %154 = vmatprep.subr.mxu0 0.0
  %155 = vmatpush1.xpose.msra.mxu0 0.0
  %156 = vmatprep.subr.mxu0 0.0
  %157 = vmatpush1.xpose.msra.mxu0 0.0
  %158 = vmatprep.subr.mxu0 0.0
  %159 = vmatpush1.xpose.msra.mxu0 0.0
  %160 = vmatprep.subr.mxu0 0.0
  %161 = vmatpush1.xpose.msra.mxu0 0.0
  %162 = vmatprep.subr.mxu0 0.0
  %163 = vmatpush1.xpose.msra.mxu0 0.0
  %164 = vmatprep.subr.mxu0 0.0
  %165 = vmatpush1.xpose.msra.mxu0 0.0
  %166 = vmatprep.subr.mxu0 0.0
  %167 = vmatpush1.xpose.msra.mxu0 0.0
  %168 = vmatprep.subr.mxu0 0.0
  %169 = vmatpush1.xpose.msra.mxu0 0.0
  %170 = vmatprep.subr.mxu0 0.0
  %171 = vmatpush1.xpose.msra.mxu0 0.0
  %172 = vmatprep.subr.mxu0 0.0
  %173 = vmatpush1.xpose.msra.mxu0 0.0
  %174 = vmatprep.subr.mxu0 0.0
  %175 = vmatpush1.xpose.msra.mxu0 0.0
  %176 = vmatprep.subr.mxu0 0.0
  %177 = vmatpush1.xpose.msra.mxu0 0.0
  %178 = vmatprep.subr.mxu0 0.0
  %179 = vmatpush1.xpose.msra.mxu0 0.0
  %180 = vmatprep.subr.mxu0 0.0
  %181 = vmatpush1.xpose.msra.mxu0 0.0
  %182 = vmatprep.subr.mxu0 0.0
  %183 = vmatpush1.xpose.msra.mxu0 0.0
  %184 = vmatprep.subr.mxu0 0.0
  %185 = vmatpush1.xpose.msra.mxu0 0.0
  %186 = vmatprep.mubr.f32.mxu0 0.0
  %187 = vmatmul.mubr.f32.gmra.mrb[0].mxu0 %v63
  %v188 = vpop.f32.mrb[0].mxu0
  %v189 = vadd.f32 %v44, %v188
  %v190 = vpop.f32.mrb[0].mxu0
  %191 = vmatprep.mubr.f32.mxu0 0.0
  %192 = vmatmul.mubr.f32.gmra.mrb[0].mxu0 %v66
  %v193 = vpop.f32.mrb[0].mxu0
  %v194 = vadd.f32 %v49, %v193
  %v195 = vpop.f32.mrb[0].mxu0
  %196 = vmatprep.mubr.f32.mxu0 0.0
  %197 = vmatmul.mubr.f32.gmra.mrb[0].mxu0 %v69
  %v198 = vpop.f32.mrb[0].mxu0
  %v199 = vadd.f32 %v54, %v198
  %v200 = vpop.f32.mrb[0].mxu0
  %201 = vmatprep.mubr.f32.mxu0 0.0
  %202 = vmatmul.mubr.f32.gmra.mrb[0].mxu0 %v72
  %v203 = vpop.f32.mrb[0].mxu0
  %v204 = vadd.f32 %v59, %v203
  %v205 = vpop.f32.mrb[0].mxu0
  %206 = vdwg.mxu0
  %v207 = vmax.f32 %v189, 0.0
  %v208 = vmax.f32 %v194, 0.0
  %v209 = vmax.f32 %v199, 0.0
  %v210 = vmax.f32 %v204, 0.0
  %v211 = vld [vmem:[%s2] sm:$0xff]
  %v212 = vld [vmem:[%s2 + $0x8] sm:$0xff]
  %v213 = vld [vmem:[%s2 + $0x10] sm:$0xff]
  %v214 = vld [vmem:[%s2 + $0x18] sm:$0xff]
  %v215 = vld [vmem:[%s3 + $0x20] sm:$0xff]
  %v216 = vld [vmem:[%s3 + $0x28] sm:$0xff]
  %v217 = vld [vmem:[%s3 + $0x30] sm:$0xff]
  %v218 = vld [vmem:[%s3 + $0x38] sm:$0xff]
  %220 = vset.pattern.permute.xlu0 0
  %221 = vperm.xlu0 %220, %v215
  %v222 = vpop.permute.xlu0 %221
  %225 = vset.pattern.permute.xlu0 0
  %226 = vperm.xlu0 %225, %v216
  %v227 = vpop.permute.xlu0 %226
  %230 = vset.pattern.permute.xlu0 0
  %231 = vperm.xlu0 %230, %v217
  %v232 = vpop.permute.xlu0 %231
  %235 = vset.pattern.permute.xlu0 0
  %236 = vperm.xlu0 %235, %v218
  %v237 = vpop.permute.xlu0 %236
  %vm239 = vcmask 261120
  %v241 = vsel %vm239, %v211, 0
  %v244 = vsel %vm239, %v212, 0
  %v247 = vsel %vm239, %v213, 0
  %v250 = vsel %vm239, %v214, 0
  %252 = vmatprep.subr.mxu0 0.0
  %253 = vmatpush1.msra.mxu0 %v207
  %254 = vmatprep.subr.mxu0 0.0
  %255 = vmatpush1.msra.mxu0 %v208
  %256 = vmatprep.subr.mxu0 0.0
  %257 = vmatpush1.msra.mxu0 %v209
  %258 = vmatprep.subr.mxu0 0.0
  %259 = vmatpush1.msra.mxu0 %v210
  %260 = vmatprep.subr.mxu0 0.0
  %261 = vmatpush1.msra.mxu0 0.0
  %262 = vmatprep.subr.mxu0 0.0
  %263 = vmatpush1.msra.mxu0 0.0
  %264 = vmatprep.subr.mxu0 0.0
  %265 = vmatpush1.msra.mxu0 0.0
  %266 = vmatprep.subr.mxu0 0.0
  %267 = vmatpush1.msra.mxu0 0.0
  %268 = vmatprep.subr.mxu0 0.0
  %269 = vmatpush1.msra.mxu0 0.0
  %270 = vmatprep.subr.mxu0 0.0
  %271 = vmatpush1.msra.mxu0 0.0
  %272 = vmatprep.subr.mxu0 0.0
  %273 = vmatpush1.msra.mxu0 0.0
  %274 = vmatprep.subr.mxu0 0.0
  %275 = vmatpush1.msra.mxu0 0.0
  %276 = vmatprep.subr.mxu0 0.0
  %277 = vmatpush1.msra.mxu0 0.0
  %278 = vmatprep.subr.mxu0 0.0
  %279 = vmatpush1.msra.mxu0 0.0
  %280 = vmatprep.subr.mxu0 0.0
  %281 = vmatpush1.msra.mxu0 0.0
  %282 = vmatprep.subr.mxu0 0.0
  %283 = vmatpush1.msra.mxu0 0.0
  %284 = vmatprep.subr.mxu0 0.0
  %285 = vmatpush1.msra.mxu0 0.0
  %286 = vmatprep.subr.mxu0 0.0
  %287 = vmatpush1.msra.mxu0 0.0
  %288 = vmatprep.subr.mxu0 0.0
  %289 = vmatpush1.msra.mxu0 0.0
  %290 = vmatprep.subr.mxu0 0.0
  %291 = vmatpush1.msra.mxu0 0.0
  %292 = vmatprep.subr.mxu0 0.0
  %293 = vmatpush1.msra.mxu0 0.0
  %294 = vmatprep.subr.mxu0 0.0
  %295 = vmatpush1.msra.mxu0 0.0
  %296 = vmatprep.subr.mxu0 0.0
  %297 = vmatpush1.msra.mxu0 0.0
  %298 = vmatprep.subr.mxu0 0.0
  %299 = vmatpush1.msra.mxu0 0.0
  %300 = vmatprep.subr.mxu0 0.0
  %301 = vmatpush1.msra.mxu0 0.0
  %302 = vmatprep.subr.mxu0 0.0
  %303 = vmatpush1.msra.mxu0 0.0
  %304 = vmatprep.subr.mxu0 0.0
  %305 = vmatpush1.msra.mxu0 0.0
  %306 = vmatprep.subr.mxu0 0.0
  %307 = vmatpush1.msra.mxu0 0.0
  %308 = vmatprep.subr.mxu0 0.0
  %309 = vmatpush1.msra.mxu0 0.0
  %310 = vmatprep.subr.mxu0 0.0
  %311 = vmatpush1.msra.mxu0 0.0
  %312 = vmatprep.subr.mxu0 0.0
  %313 = vmatpush1.msra.mxu0 0.0
  %314 = vmatprep.subr.mxu0 0.0
  %315 = vmatpush1.msra.mxu0 0.0
  %316 = vmatprep.mubr.f32.mxu0 0.0
  %317 = vmatmul.mubr.f32.gmra.mrb[0].mxu0 %v241
  %v318 = vpop.f32.mrb[0].mxu0
  %v319 = vadd.f32 %v222, %v318
  %v320 = vpop.f32.mrb[0].mxu0
  %321 = vmatprep.mubr.f32.mxu0 0.0
  %322 = vmatmul.mubr.f32.gmra.mrb[0].mxu0 %v244
  %v323 = vpop.f32.mrb[0].mxu0
  %v324 = vadd.f32 %v227, %v323
  %v325 = vpop.f32.mrb[0].mxu0
  %326 = vmatprep.mubr.f32.mxu0 0.0
  %327 = vmatmul.mubr.f32.gmra.mrb[0].mxu0 %v247
  %v328 = vpop.f32.mrb[0].mxu0
  %v329 = vadd.f32 %v232, %v328
  %v330 = vpop.f32.mrb[0].mxu0
  %331 = vmatprep.mubr.f32.mxu0 0.0
  %332 = vmatmul.mubr.f32.gmra.mrb[0].mxu0 %v250
  %v333 = vpop.f32.mrb[0].mxu0
  %v334 = vadd.f32 %v237, %v333
  %v335 = vpop.f32.mrb[0].mxu0
  %336 = vdwg.mxu0
  %v337 = vmax.f32 %v319, 0.0
  %v338 = vmax.f32 %v324, 0.0
  %v339 = vmax.f32 %v329, 0.0
  %v340 = vmax.f32 %v334, 0.0
  %v341 = vld [vmem:[%s2 + $0x20] sm:$0xff]
  %v342 = vld [vmem:[%s2 + $0x28] sm:$0xff]
  %v343 = vld [vmem:[%s2 + $0x30] sm:$0xff]
  %v344 = vld [vmem:[%s2 + $0x38] sm:$0xff]
  %v345 = vld [vmem:[%s3 + $0x40] sm:$0xff]
  %v346 = vld [vmem:[%s3 + $0x48] sm:$0xff]
  %v347 = vld [vmem:[%s3 + $0x50] sm:$0xff]
  %v348 = vld [vmem:[%s3 + $0x58] sm:$0xff]
  %350 = vset.pattern.permute.xlu0 0
  %351 = vperm.xlu0 %350, %v345
  %v352 = vpop.permute.xlu0 %351
  %355 = vset.pattern.permute.xlu0 0
  %356 = vperm.xlu0 %355, %v346
  %v357 = vpop.permute.xlu0 %356
  %360 = vset.pattern.permute.xlu0 0
  %361 = vperm.xlu0 %360, %v347
  %v362 = vpop.permute.xlu0 %361
  %365 = vset.pattern.permute.xlu0 0
  %366 = vperm.xlu0 %365, %v348
  %v367 = vpop.permute.xlu0 %366
  %v370 = vsel %vm239, %v341, 0
  %v373 = vsel %vm239, %v342, 0
  %v376 = vsel %vm239, %v343, 0
  %v379 = vsel %vm239, %v344, 0
  %381 = vmatprep.subr.mxu0 0.0
  %382 = vmatpush1.msra.mxu0 %v337
  %383 = vmatprep.subr.mxu0 0.0
  %384 = vmatpush1.msra.mxu0 %v338
  %385 = vmatprep.subr.mxu0 0.0
  %386 = vmatpush1.msra.mxu0 %v339
  %387 = vmatprep.subr.mxu0 0.0
  %388 = vmatpush1.msra.mxu0 %v340
  %389 = vmatprep.subr.mxu0 0.0
  %390 = vmatpush1.msra.mxu0 0.0
  %391 = vmatprep.subr.mxu0 0.0
  %392 = vmatpush1.msra.mxu0 0.0
  %393 = vmatprep.subr.mxu0 0.0
  %394 = vmatpush1.msra.mxu0 0.0
  %395 = vmatprep.subr.mxu0 0.0
  %396 = vmatpush1.msra.mxu0 0.0
  %397 = vmatprep.subr.mxu0 0.0
  %398 = vmatpush1.msra.mxu0 0.0
  %399 = vmatprep.subr.mxu0 0.0
  %400 = vmatpush1.msra.mxu0 0.0
  %401 = vmatprep.subr.mxu0 0.0
  %402 = vmatpush1.msra.mxu0 0.0
  %403 = vmatprep.subr.mxu0 0.0
  %404 = vmatpush1.msra.mxu0 0.0
  %405 = vmatprep.subr.mxu0 0.0
  %406 = vmatpush1.msra.mxu0 0.0
  %407 = vmatprep.subr.mxu0 0.0
  %408 = vmatpush1.msra.mxu0 0.0
  %409 = vmatprep.subr.mxu0 0.0
  %410 = vmatpush1.msra.mxu0 0.0
  %411 = vmatprep.subr.mxu0 0.0
  %412 = vmatpush1.msra.mxu0 0.0
  %413 = vmatprep.subr.mxu0 0.0
  %414 = vmatpush1.msra.mxu0 0.0
  %415 = vmatprep.subr.mxu0 0.0
  %416 = vmatpush1.msra.mxu0 0.0
  %417 = vmatprep.subr.mxu0 0.0
  %418 = vmatpush1.msra.mxu0 0.0
  %419 = vmatprep.subr.mxu0 0.0
  %420 = vmatpush1.msra.mxu0 0.0
  %421 = vmatprep.subr.mxu0 0.0
  %422 = vmatpush1.msra.mxu0 0.0
  %423 = vmatprep.subr.mxu0 0.0
  %424 = vmatpush1.msra.mxu0 0.0
  %425 = vmatprep.subr.mxu0 0.0
  %426 = vmatpush1.msra.mxu0 0.0
  %427 = vmatprep.subr.mxu0 0.0
  %428 = vmatpush1.msra.mxu0 0.0
  %429 = vmatprep.subr.mxu0 0.0
  %430 = vmatpush1.msra.mxu0 0.0
  %431 = vmatprep.subr.mxu0 0.0
  %432 = vmatpush1.msra.mxu0 0.0
  %433 = vmatprep.subr.mxu0 0.0
  %434 = vmatpush1.msra.mxu0 0.0
  %435 = vmatprep.subr.mxu0 0.0
  %436 = vmatpush1.msra.mxu0 0.0
  %437 = vmatprep.subr.mxu0 0.0
  %438 = vmatpush1.msra.mxu0 0.0
  %439 = vmatprep.subr.mxu0 0.0
  %440 = vmatpush1.msra.mxu0 0.0
  %441 = vmatprep.subr.mxu0 0.0
  %442 = vmatpush1.msra.mxu0 0.0
  %443 = vmatprep.subr.mxu0 0.0
  %444 = vmatpush1.msra.mxu0 0.0
  %445 = vmatprep.mubr.f32.mxu0 0.0
  %446 = vmatmul.mubr.f32.gmra.mrb[0].mxu0 %v370
  %v447 = vpop.f32.mrb[0].mxu0
  %v448 = vadd.f32 %v352, %v447
  %v449 = vpop.f32.mrb[0].mxu0
  %450 = vmatprep.mubr.f32.mxu0 0.0
  %451 = vmatmul.mubr.f32.gmra.mrb[0].mxu0 %v373
  %v452 = vpop.f32.mrb[0].mxu0
  %v453 = vadd.f32 %v357, %v452
  %v454 = vpop.f32.mrb[0].mxu0
  %455 = vmatprep.mubr.f32.mxu0 0.0
  %456 = vmatmul.mubr.f32.gmra.mrb[0].mxu0 %v376
  %v457 = vpop.f32.mrb[0].mxu0
  %v458 = vadd.f32 %v362, %v457
  %v459 = vpop.f32.mrb[0].mxu0
  %460 = vmatprep.mubr.f32.mxu0 0.0
  %461 = vmatmul.mubr.f32.gmra.mrb[0].mxu0 %v379
  %v462 = vpop.f32.mrb[0].mxu0
  %v463 = vadd.f32 %v367, %v462
  %v464 = vpop.f32.mrb[0].mxu0
  %465 = vdwg.mxu0
  %v466 = vmax.f32 %v448, 0.0
  %v467 = vmax.f32 %v453, 0.0
  %v468 = vmax.f32 %v458, 0.0
  %v469 = vmax.f32 %v463, 0.0
  %v470 = vld [vmem:[%s2 + $0x40] sm:$0xff]
  %v471 = vld [vmem:[%s2 + $0x48] sm:$0xff]
  %v472 = vld [vmem:[%s2 + $0x50] sm:$0xff]
  %v473 = vld [vmem:[%s2 + $0x58] sm:$0xff]
  %v474 = vld [vmem:[%s3 + $0x60] sm:$0xff]
  %v475 = vld [vmem:[%s3 + $0x68] sm:$0xff]
  %v476 = vld [vmem:[%s3 + $0x70] sm:$0xff]
  %v477 = vld [vmem:[%s3 + $0x78] sm:$0xff]
  %479 = vset.pattern.permute.xlu0 0
  %480 = vperm.xlu0 %479, %v474
  %v481 = vpop.permute.xlu0 %480
  %484 = vset.pattern.permute.xlu0 0
  %485 = vperm.xlu0 %484, %v475
  %v486 = vpop.permute.xlu0 %485
  %489 = vset.pattern.permute.xlu0 0
  %490 = vperm.xlu0 %489, %v476
  %v491 = vpop.permute.xlu0 %490
  %494 = vset.pattern.permute.xlu0 0
  %495 = vperm.xlu0 %494, %v477
  %v496 = vpop.permute.xlu0 %495
  %v499 = vsel %vm239, %v470, 0
  %v502 = vsel %vm239, %v471, 0
  %v505 = vsel %vm239, %v472, 0
  %v508 = vsel %vm239, %v473, 0
  %510 = vmatprep.subr.mxu0 0.0
  %511 = vmatpush1.msra.mxu0 %v466
  %512 = vmatprep.subr.mxu0 0.0
  %513 = vmatpush1.msra.mxu0 %v467
  %514 = vmatprep.subr.mxu0 0.0
  %515 = vmatpush1.msra.mxu0 %v468
  %516 = vmatprep.subr.mxu0 0.0
  %517 = vmatpush1.msra.mxu0 %v469
  %518 = vmatprep.subr.mxu0 0.0
  %519 = vmatpush1.msra.mxu0 0.0
  %520 = vmatprep.subr.mxu0 0.0
  %521 = vmatpush1.msra.mxu0 0.0
  %522 = vmatprep.subr.mxu0 0.0
  %523 = vmatpush1.msra.mxu0 0.0
  %524 = vmatprep.subr.mxu0 0.0
  %525 = vmatpush1.msra.mxu0 0.0
  %526 = vmatprep.subr.mxu0 0.0
  %527 = vmatpush1.msra.mxu0 0.0
  %528 = vmatprep.subr.mxu0 0.0
  %529 = vmatpush1.msra.mxu0 0.0
  %530 = vmatprep.subr.mxu0 0.0
  %531 = vmatpush1.msra.mxu0 0.0
  %532 = vmatprep.subr.mxu0 0.0
  %533 = vmatpush1.msra.mxu0 0.0
  %534 = vmatprep.subr.mxu0 0.0
  %535 = vmatpush1.msra.mxu0 0.0
  %536 = vmatprep.subr.mxu0 0.0
  %537 = vmatpush1.msra.mxu0 0.0
  %538 = vmatprep.subr.mxu0 0.0
  %539 = vmatpush1.msra.mxu0 0.0
  %540 = vmatprep.subr.mxu0 0.0
  %541 = vmatpush1.msra.mxu0 0.0
  %542 = vmatprep.subr.mxu0 0.0
  %543 = vmatpush1.msra.mxu0 0.0
  %544 = vmatprep.subr.mxu0 0.0
  %545 = vmatpush1.msra.mxu0 0.0
  %546 = vmatprep.subr.mxu0 0.0
  %547 = vmatpush1.msra.mxu0 0.0
  %548 = vmatprep.subr.mxu0 0.0
  %549 = vmatpush1.msra.mxu0 0.0
  %550 = vmatprep.subr.mxu0 0.0
  %551 = vmatpush1.msra.mxu0 0.0
  %552 = vmatprep.subr.mxu0 0.0
  %553 = vmatpush1.msra.mxu0 0.0
  %554 = vmatprep.subr.mxu0 0.0
  %555 = vmatpush1.msra.mxu0 0.0
  %556 = vmatprep.subr.mxu0 0.0
  %557 = vmatpush1.msra.mxu0 0.0
  %558 = vmatprep.subr.mxu0 0.0
  %559 = vmatpush1.msra.mxu0 0.0
  %560 = vmatprep.subr.mxu0 0.0
  %561 = vmatpush1.msra.mxu0 0.0
  %562 = vmatprep.subr.mxu0 0.0
  %563 = vmatpush1.msra.mxu0 0.0
  %564 = vmatprep.subr.mxu0 0.0
  %565 = vmatpush1.msra.mxu0 0.0
  %566 = vmatprep.subr.mxu0 0.0
  %567 = vmatpush1.msra.mxu0 0.0
  %568 = vmatprep.subr.mxu0 0.0
  %569 = vmatpush1.msra.mxu0 0.0
  %570 = vmatprep.subr.mxu0 0.0
  %571 = vmatpush1.msra.mxu0 0.0
  %572 = vmatprep.subr.mxu0 0.0
  %573 = vmatpush1.msra.mxu0 0.0
  %574 = vmatprep.mubr.f32.mxu0 0.0
  %575 = vmatmul.mubr.f32.gmra.mrb[0].mxu0 %v499
  %v576 = vpop.f32.mrb[0].mxu0
  %v577 = vadd.f32 %v481, %v576
  %v578 = vpop.f32.mrb[0].mxu0
  %579 = vmatprep.mubr.f32.mxu0 0.0
  %580 = vmatmul.mubr.f32.gmra.mrb[0].mxu0 %v502
  %v581 = vpop.f32.mrb[0].mxu0
  %v582 = vadd.f32 %v486, %v581
  %v583 = vpop.f32.mrb[0].mxu0
  %584 = vmatprep.mubr.f32.mxu0 0.0
  %585 = vmatmul.mubr.f32.gmra.mrb[0].mxu0 %v505
  %v586 = vpop.f32.mrb[0].mxu0
  %v587 = vadd.f32 %v491, %v586
  %v588 = vpop.f32.mrb[0].mxu0
  %589 = vmatprep.mubr.f32.mxu0 0.0
  %590 = vmatmul.mubr.f32.gmra.mrb[0].mxu0 %v508
  %v591 = vpop.f32.mrb[0].mxu0
  %v592 = vadd.f32 %v496, %v591
  %v593 = vpop.f32.mrb[0].mxu0
  %594 = vdwg.mxu0
  %v595 = vmax.f32 %v577, 0.0
  %v596 = vmax.f32 %v582, 0.0
  %v597 = vmax.f32 %v587, 0.0
  %v598 = vmax.f32 %v592, 0.0
  %v599 = vld [vmem:[%s2 + $0x60] sm:$0xff]
  %v600 = vld [vmem:[%s3 + $0x80] sm:$0xff]
  %602 = vset.pattern.permute.xlu0 0
  %603 = vperm.xlu0 %602, %v600
  %v604 = vpop.permute.xlu0 %603
  %v607 = vsel %vm239, %v599, 0
  %609 = vmatprep.subr.mxu0 0.0
  %610 = vmatpush1.msra.mxu0 %v595
  %611 = vmatprep.subr.mxu0 0.0
  %612 = vmatpush1.msra.mxu0 %v596
  %613 = vmatprep.subr.mxu0 0.0
  %614 = vmatpush1.msra.mxu0 %v597
  %615 = vmatprep.subr.mxu0 0.0
  %616 = vmatpush1.msra.mxu0 %v598
  %617 = vmatprep.subr.mxu0 0.0
  %618 = vmatpush1.msra.mxu0 0.0
  %619 = vmatprep.subr.mxu0 0.0
  %620 = vmatpush1.msra.mxu0 0.0
  %621 = vmatprep.subr.mxu0 0.0
  %622 = vmatpush1.msra.mxu0 0.0
  %623 = vmatprep.subr.mxu0 0.0
  %624 = vmatpush1.msra.mxu0 0.0
  %625 = vmatprep.subr.mxu0 0.0
  %626 = vmatpush1.msra.mxu0 0.0
  %627 = vmatprep.subr.mxu0 0.0
  %628 = vmatpush1.msra.mxu0 0.0
  %629 = vmatprep.subr.mxu0 0.0
  %630 = vmatpush1.msra.mxu0 0.0
  %631 = vmatprep.subr.mxu0 0.0
  %632 = vmatpush1.msra.mxu0 0.0
  %633 = vmatprep.subr.mxu0 0.0
  %634 = vmatpush1.msra.mxu0 0.0
  %635 = vmatprep.subr.mxu0 0.0
  %636 = vmatpush1.msra.mxu0 0.0
  %637 = vmatprep.subr.mxu0 0.0
  %638 = vmatpush1.msra.mxu0 0.0
  %639 = vmatprep.subr.mxu0 0.0
  %640 = vmatpush1.msra.mxu0 0.0
  %641 = vmatprep.subr.mxu0 0.0
  %642 = vmatpush1.msra.mxu0 0.0
  %643 = vmatprep.subr.mxu0 0.0
  %644 = vmatpush1.msra.mxu0 0.0
  %645 = vmatprep.subr.mxu0 0.0
  %646 = vmatpush1.msra.mxu0 0.0
  %647 = vmatprep.subr.mxu0 0.0
  %648 = vmatpush1.msra.mxu0 0.0
  %649 = vmatprep.subr.mxu0 0.0
  %650 = vmatpush1.msra.mxu0 0.0
  %651 = vmatprep.subr.mxu0 0.0
  %652 = vmatpush1.msra.mxu0 0.0
  %653 = vmatprep.subr.mxu0 0.0
  %654 = vmatpush1.msra.mxu0 0.0
  %655 = vmatprep.subr.mxu0 0.0
  %656 = vmatpush1.msra.mxu0 0.0
  %657 = vmatprep.subr.mxu0 0.0
  %658 = vmatpush1.msra.mxu0 0.0
  %659 = vmatprep.subr.mxu0 0.0
  %660 = vmatpush1.msra.mxu0 0.0
  %661 = vmatprep.subr.mxu0 0.0
  %662 = vmatpush1.msra.mxu0 0.0
  %663 = vmatprep.subr.mxu0 0.0
  %664 = vmatpush1.msra.mxu0 0.0
  %665 = vmatprep.subr.mxu0 0.0
  %666 = vmatpush1.msra.mxu0 0.0
  %667 = vmatprep.subr.mxu0 0.0
  %668 = vmatpush1.msra.mxu0 0.0
  %669 = vmatprep.subr.mxu0 0.0
  %670 = vmatpush1.msra.mxu0 0.0
  %671 = vmatprep.subr.mxu0 0.0
  %672 = vmatpush1.msra.mxu0 0.0
  %673 = vmatprep.mubr.f32.mxu0 0.0
  %674 = vmatmul.mubr.f32.gmra.mrb[0].mxu0 %v607
  %v675 = vpop.f32.mrb[0].mxu0
  %v676 = vadd.f32 %v604, %v675
  %v677 = vpop.f32.mrb[0].mxu0
  %678 = vdwg.mxu0
  %v679 = vsub.f32 0.0, %v676
  %v680 = vmul.f32 %v679, 1.442695
  %v681 = vpow.pop %v680
  %v682 = vadd.f32 %v681, 1.0
  %v683 = vrcp.pop %v682
  %v684 = vmul.f32 1.0, %v683
  %685 = vst [vmem:[%s4] sm:$0x1] %v684
  // Predicated region
  $region18: #{iris_bcf_forward.1} parent=0 // pred_check
    _
  $region19: #{iris_bcf_forward.1} parent=0 // pred_check_branch
    %687 = sbr.rel (0) target = $region21
  $region20: #{iris_bcf_forward.1} parent=0 // pred_region
    _
  $region21: #{iris_bcf_forward.1} parent=0 // pred_fallthru
    _
  // Predicated region
  $region22: #{iris_bcf_forward.1} parent=0 // pred_check
    _
  $region23: #{iris_bcf_forward.1} parent=0 // pred_check_branch
    %689 = sbr.rel (0) target = $region25
  $region24: #{iris_bcf_forward.1} parent=0 // pred_region
    _
  $region25: #{iris_bcf_forward.1} parent=0 // pred_fallthru
    _

</llo_original>
